<compile_context>
chip_gen: v7x
topology: tpu7x:2x2x1
jax: 0.10.0
libtpu: 0.0.40
codegen_flags: <defaults>
</compile_context>

<pallas_src>
import jax
import jax.numpy as jnp
from jax.experimental import pallas as pl
from jax.experimental.pallas import tpu as pltpu
import numpy as np


def _bilinear_kernel(lhs_ref, rhs_ref, w_ref, b_ref, out_ref):
    # lhs_ref: (tm, A)   w_ref: (A, C)   rhs_ref: (tm, C)
    # b_ref:   (1,) f32 in SMEM (bias, with any uniform s_bias folded in)
    # out_ref: (1, 1, tm) f32 packed lane-dense scores for this row tile.
    t = jnp.dot(lhs_ref[...], w_ref[...], preferred_element_type=jnp.float32)
    prod = t * rhs_ref[...].astype(jnp.float32)                  # f32 reduction
    score = jnp.sum(prod, axis=-1, keepdims=True) + b_ref[0]     # (tm, 1) f32
    # (tm, 1) -> (1, tm): XLU transpose (free slot), then a leading unit dim.
    out_ref[...] = jnp.transpose(score)[None]


def _pick_tile_rows(B, row_bytes, w_bytes):
    """Rows per grid step: full batch for small B, else 256/512-row tiles,
    capped so double-buffered row tiles + W fit a ~40 MiB VMEM budget."""
    if B <= 256:
        return B
    budget = 40 * 1024 * 1024
    avail = max(budget - 2 * w_bytes, 4 * 1024 * 1024)
    cap = avail // (2 * row_bytes + 1024)      # 2x double-buffered in + out
    cap = max(8, (cap // 8) * 8)
    tm = 256 if B <= 1024 else 512
    return int(min(tm, cap))


def discriminator_forward(S, node, weight, bias, s_bias=None, compute_dtype=None):
    """JAX/Pallas equivalent of Discriminator.forward(S, node, s_bias).

    node: (B, n_in), S: (B, n_out), weight: (n_in, n_out) or (1, n_in, n_out),
    bias: scalar / (1,).  Returns the score of shape (B, 1) float32.
    """
    node = jnp.asarray(node)
    S = jnp.asarray(S)
    weight = jnp.asarray(weight)
    weight = weight.reshape(weight.shape[-2], weight.shape[-1])  # accept (1,i,j)

    B, n_in = node.shape
    n_out = S.shape[1]

    bias_scalar = jnp.asarray(bias, dtype=jnp.float32).reshape(-1)[:1]

    # s_bias: fold None / uniform scalar into the SMEM bias; keep per-row for
    # a cheap wrapper-side add after the kernel.
    s_bias_rows = None
    if s_bias is not None:
        sb = jnp.asarray(s_bias, dtype=jnp.float32)
        if sb.size == 1:
            bias_scalar = bias_scalar + sb.reshape(-1)[:1]
        else:
            s_bias_rows = sb.reshape(B, 1)

    # Orient the matmul so the elementwise multiply / reduction runs over the
    # smaller feature dim.
    if n_out <= n_in:
        lhs, rhs, w = node, S, weight          # t = node @ W    -> (tm, n_out)
    else:
        lhs, rhs, w = S, node, weight.T        # t = S @ W.T     -> (tm, n_in)

    if compute_dtype is not None:
        lhs = lhs.astype(compute_dtype)
        rhs = rhs.astype(compute_dtype)
        w = w.astype(compute_dtype)

    A = lhs.shape[1]
    C = rhs.shape[1]

    row_bytes = lhs.dtype.itemsize * A + rhs.dtype.itemsize * C
    w_bytes = w.dtype.itemsize * A * C
    tm = _pick_tile_rows(B, row_bytes, w_bytes)
    num_tiles = int(pl.cdiv(B, tm))

    cost = pl.CostEstimate(
        flops=int(2 * B * n_in * n_out + 2 * B * min(n_in, n_out)),
        transcendentals=0,
        bytes_accessed=int(lhs.size * lhs.dtype.itemsize
                           + rhs.size * rhs.dtype.itemsize
                           + w_bytes + B * 4),
    )

    out = pl.pallas_call(
        _bilinear_kernel,
        out_shape=jax.ShapeDtypeStruct((num_tiles, 1, tm), jnp.float32),
        grid=(num_tiles,),
        in_specs=[
            pl.BlockSpec((tm, A), lambda i: (i, 0)),                 # lhs rows
            pl.BlockSpec((tm, C), lambda i: (i, 0)),                 # rhs rows
            pl.BlockSpec((A, C), lambda i: (0, 0)),                  # VMEM-resident W
            pl.BlockSpec(memory_space=pltpu.MemorySpace.SMEM),       # scalar bias
        ],
        out_specs=pl.BlockSpec((1, 1, tm), lambda i: (i, 0, 0)),     # packed scores
        compiler_params=pltpu.CompilerParams(
            dimension_semantics=("parallel",),
            vmem_limit_bytes=48 * 1024 * 1024,   # < v7x 64 MiB physical VMEM
        ),
        cost_estimate=cost,
    )(lhs, rhs, w, bias_scalar)

    score = out.reshape(num_tiles * tm)[:B].reshape(B, 1)
    if s_bias_rows is not None:
        score = score + s_bias_rows
    return score


def init_discriminator_params(key, n_in, n_out):
    """Deterministic xavier_uniform init matching nn.Bilinear(n_in, n_out, 1)."""
    # PyTorch weight shape (1, n_in, n_out): fan_in = n_in*n_out, fan_out = n_out
    bound = float(np.sqrt(6.0 / (n_in * n_out + n_out)))
    w = jax.random.uniform(
        key, (n_in, n_out), dtype=jnp.float32, minval=-bound, maxval=bound
    )
    b = jnp.zeros((1,), dtype=jnp.float32)  # bias.data.fill_(0.0)
    return w, b


if __name__ == "__main__":
    key = jax.random.PRNGKey(0)
    k_w, k_node, k_s, k_sb, k_n2, k_s2 = jax.random.split(key, 6)

    # ---- small case: batch=8, n_in=n_out=32, with and without s_bias --------
    n_in, n_out, batch = 32, 32, 8
    weight, bias = init_discriminator_params(k_w, n_in, n_out)
    node = jax.random.normal(k_node, (batch, n_in), dtype=jnp.float32)
    S = jax.random.normal(k_s, (batch, n_out), dtype=jnp.float32)
    ref = jnp.einsum("bi,ij,bj->b", node, weight, S)[:, None] + bias[0]

    score = jax.block_until_ready(discriminator_forward(S, node, weight, bias))
    assert score.shape == (batch, 1)
    np.testing.assert_allclose(np.asarray(score), np.asarray(ref),
                               rtol=1e-5, atol=1e-5)

    s_bias_vec = jax.random.normal(k_sb, (batch, 1), dtype=jnp.float32)
    score_sb = jax.block_until_ready(
        discriminator_forward(S, node, weight, bias, s_bias=s_bias_vec))
    np.testing.assert_allclose(np.asarray(score_sb),
                               np.asarray(ref + s_bias_vec),
                               rtol=1e-5, atol=1e-5)

    # ---- multi-tile case with a partial edge block (B=300 > 256),
    # ---- asymmetric features (exercises the W.T orientation) ----------------
    n_in2, n_out2, batch2 = 48, 64, 300
    w2, b2 = init_discriminator_params(k_w, n_in2, n_out2)
    node2 = jax.random.normal(k_n2, (batch2, n_in2), dtype=jnp.float32)
    S2 = jax.random.normal(k_s2, (batch2, n_out2), dtype=jnp.float32)
    ref2 = jnp.einsum("bi,ij,bj->b", node2, w2, S2)[:, None] + b2[0]

    score2 = jax.block_until_ready(discriminator_forward(S2, node2, w2, b2))
    assert score2.shape == (batch2, 1)
    np.testing.assert_allclose(np.asarray(score2), np.asarray(ref2),
                               rtol=1e-3, atol=1e-3)

    # bf16 compute path (halves input HBM bytes; f32 accumulation).
    score2_bf16 = jax.block_until_ready(
        discriminator_forward(S2, node2, w2, b2, compute_dtype=jnp.bfloat16))
    np.testing.assert_allclose(np.asarray(score2_bf16), np.asarray(ref2),
                               rtol=5e-2, atol=1e-1)

    print("KERNEL_OK")
</pallas_src>

<mosaic_0001>
module attributes {stable_mosaic.version = 11 : i64} {
  func.func @_bilinear_kernel(%arg0: i32, %arg1: memref<8x32xf32, #tpu.memory_space<vmem>>, %arg2: memref<8x32xf32, #tpu.memory_space<vmem>>, %arg3: memref<32x32xf32, #tpu.memory_space<vmem>>, %arg4: memref<1xf32, #tpu.memory_space<smem>>, %arg5: memref<1x1x8xf32, #tpu.memory_space<vmem>>) attributes {dimension_semantics = [#tpu.dimension_semantics<parallel>], iteration_bounds = array<i64: 1>, scalar_prefetch = 0 : i64, scratch_operands = 0 : i64, tpu.core_type = #tpu.core_type<tc>, window_params = [{transform_indices = @transform_0, window_bounds = array<i64: 8, 32>}, {transform_indices = @transform_1, window_bounds = array<i64: 8, 32>}, {pipeline_mode = #tpu.pipeline_mode<synchronous>, transform_indices = @transform_2, window_bounds = array<i64: 32, 32>}, {transform_indices = @transform_3, window_bounds = array<i64: 1>}, {transform_indices = @transform_4, window_bounds = array<i64: 1, 1, 8>}]} {
    %c0 = arith.constant 0 : index
    %c0_0 = arith.constant 0 : index
    %0 = vector.load %arg1[%c0, %c0_0] : memref<8x32xf32, #tpu.memory_space<vmem>>, vector<8x32xf32>
    %c0_1 = arith.constant 0 : index
    %c0_2 = arith.constant 0 : index
    %1 = vector.load %arg3[%c0_1, %c0_2] : memref<32x32xf32, #tpu.memory_space<vmem>>, vector<32x32xf32>
    %cst = arith.constant dense<0.000000e+00> : vector<8x32xf32>
    %2 = tpu.matmul %0, %1, %cst {dimension_numbers = #tpu.dot_dimension_numbers<[1], [0], [0], [1], [0, 0, 1, 1], [], []>} : vector<8x32xf32>, vector<32x32xf32>, vector<8x32xf32> -> vector<8x32xf32>
    %c0_3 = arith.constant 0 : index
    %c0_4 = arith.constant 0 : index
    %3 = vector.load %arg2[%c0_3, %c0_4] : memref<8x32xf32, #tpu.memory_space<vmem>>, vector<8x32xf32>
    %4 = arith.mulf %2, %3 : vector<8x32xf32>
    %cst_5 = arith.constant dense<0.000000e+00> : vector<8xf32>
    %5 = vector.multi_reduction <add>, %4, %cst_5 [1] : vector<8x32xf32> to vector<8xf32>
    %6 = vector.shape_cast %5 : vector<8xf32> to vector<8x1xf32>
    %c0_6 = arith.constant 0 : index
    %7 = memref.load %arg4[%c0_6] : memref<1xf32, #tpu.memory_space<smem>>
    %8 = vector.broadcast %7 : f32 to vector<8x1xf32>
    %9 = arith.addf %6, %8 : vector<8x1xf32>
    %10 = tpu.transpose %9, [1, 0] : vector<8x1xf32> -> vector<1x8xf32>
    %11 = vector.shape_cast %10 : vector<1x8xf32> to vector<1x1x8xf32>
    %c0_7 = arith.constant 0 : index
    %c0_8 = arith.constant 0 : index
    %c0_9 = arith.constant 0 : index
    %12 = vector.load %arg5[%c0_7, %c0_8, %c0_9] : memref<1x1x8xf32, #tpu.memory_space<vmem>>, vector<1x1x8xf32>
    tpu.vector_store %arg5[%c0_7, %c0_8, %c0_9], %11 {strides = array<i32>} : memref<1x1x8xf32, #tpu.memory_space<vmem>>, vector<1x1x8xf32>,
    return
  }
  func.func @transform_0(%arg0: i32) -> (i32, i32) {
    %c0_i32 = arith.constant 0 : i32
    %c0_i32_0 = arith.constant 0 : i32
    return %arg0, %c0_i32 : i32, i32
  }
  func.func @transform_1(%arg0: i32) -> (i32, i32) {
    %c0_i32 = arith.constant 0 : i32
    %c0_i32_0 = arith.constant 0 : i32
    return %arg0, %c0_i32 : i32, i32
  }
  func.func @transform_2(%arg0: i32) -> (i32, i32) {
    %c0_i32 = arith.constant 0 : i32
    %c0_i32_0 = arith.constant 0 : i32
    %c0_i32_1 = arith.constant 0 : i32
    return %c0_i32, %c0_i32_0 : i32, i32
  }
  func.func @transform_3(%arg0: i32) -> i32 {
    %c0_i32 = arith.constant 0 : i32
    %c0_i32_0 = arith.constant 0 : i32
    return %c0_i32 : i32
  }
  func.func @transform_4(%arg0: i32) -> (i32, i32, i32) {
    %c0_i32 = arith.constant 0 : i32
    %c0_i32_0 = arith.constant 0 : i32
    %c0_i32_1 = arith.constant 0 : i32
    return %arg0, %c0_i32, %c0_i32_0 : i32, i32, i32
  }
}

</mosaic_0001>

<llo_original>
// kernel: tpu_custom_call.1
$region0: #{tpu_custom_call.1}
  #allocation0 [shape = 'u32[]', space=smem, size = 0x4, offset = 0x4, fixed_abs, tag = 'smem constant byte address 0x4 - core index']
  #allocation1 [shape = 'u32[144,128]{1,0:T(1,128)}', space=vmem, size = 0x12000, scoped, tag = 'internal scratch']
  #allocation2 [shape = 'f32[1]{0:T(128)S(6)}', space=smem, size = 0x200, scoped, tag = 'scoped memory for tpu_custom_call.1']
  %s0 = inlined_call_operand.hbm [shape: f32[8,32], index: 0, kind: input, shape index: {}]
  %s1 = inlined_call_operand.hbm [shape: f32[8,32], index: 1, kind: input, shape index: {}]
  %s2 = inlined_call_operand.hbm [shape: f32[32,32], index: 2, kind: input, shape index: {}]
  %s3 = inlined_call_operand.<no memory space> [shape: f32[1], index: 3, kind: input, shape index: {}]
  %s4 = inlined_call_operand.hbm [shape: f32[1,1,8], index: 4, kind: output, shape index: {}]
  %s5 = sld [smem:[#allocation0]]
  $region38: #{tpu_custom_call.1} parent=0
    _
  %s7 = ssub.s32 1, %s5
  %s8 = scalar_select 0, %s7, %s5
  %9 = sst [smem:[#allocation2]] %s3
  $region1: #{tpu_custom_call.1} parent=0
    #allocation3 [shape = 'u8[4096]{0}', space=vmem, size = 0x1000, scoped, tag = 'input window, operand 0, single buffered']
    #allocation4 [shape = 's32[1]{0}', space=sflag, size = 0x4, scoped, tag = 'scoped memory for tpu_custom_call.1']
    #allocation5 [shape = 's32[1]{0}', space=sflag, size = 0x4, scoped, tag = 'scoped memory for tpu_custom_call.1']
    #allocation6 [shape = 'u8[4096]{0}', space=vmem, size = 0x1000, scoped, tag = 'input window, operand 1, single buffered']
    #allocation7 [shape = 's32[1]{0}', space=sflag, size = 0x4, scoped, tag = 'scoped memory for tpu_custom_call.1']
    #allocation8 [shape = 'u8[16384]{0}', space=vmem, size = 0x4000, scoped, tag = 'input window, operand 2, single buffered']
    #allocation9 [shape = 'u8[512]{0}', space=vmem, size = 0x400, scoped, tag = 'output window, operand 0, single buffered']
    %10 = vsyncpa [#allocation4], 0
    %11 = vsyncpa [#allocation7], 0
    %12 = vsyncpa [#allocation5], 0
    // Predicated region
    $region2: #{tpu_custom_call.1} parent=1 // pred_check
      _
    $region3: #{tpu_custom_call.1} parent=1 // pred_check_branch
      %14 = sbr.rel (0) target = $region5
    $region4: #{tpu_custom_call.1} parent=1 // pred_region
      %s16 = ssub.s32 128, 128
      %17 = vsyncadd [#allocation4], %s16
      %s19 = sshll.u32 [#allocation3], 4
      %s20 = int_to_ptr.vmem [resolvable:$true] %s19
      %22 = dma.hbm_to_vmem [thread:$0]  %s0, 128, %s20, [#allocation4]
    $region5: #{tpu_custom_call.1} parent=1 // pred_fallthru
      _
    // Predicated region
    $region6: #{tpu_custom_call.1} parent=1 // pred_check
      _
    $region7: #{tpu_custom_call.1} parent=1 // pred_check_branch
      %24 = sbr.rel (0) target = $region9
    $region8: #{tpu_custom_call.1} parent=1 // pred_region
      %s26 = ssub.s32 128, 128
      %27 = vsyncadd [#allocation7], %s26
      %s29 = sshll.u32 [#allocation6], 4
      %s30 = int_to_ptr.vmem [resolvable:$true] %s29
      %32 = dma.hbm_to_vmem [thread:$0]  %s1, 128, %s30, [#allocation7]
    $region9: #{tpu_custom_call.1} parent=1 // pred_fallthru
      _
    // Predicated region
    $region10: #{tpu_custom_call.1} parent=1 // pred_check
      _
    $region11: #{tpu_custom_call.1} parent=1 // pred_check_branch
      %34 = sbr.rel (0) target = $region13
    $region12: #{tpu_custom_call.1} parent=1 // pred_region
      %s36 = ssub.s32 512, 512
      %37 = vsyncadd [#allocation7], %s36
      %s38 = sshll.u32 [#allocation8], 4
      %s39 = int_to_ptr.vmem [resolvable:$true] %s38
      %44 = dma.hbm_to_vmem [thread:$0]  %s2, 512, %s39, [#allocation7], 128, 128, 8
    $region13: #{tpu_custom_call.1} parent=1 // pred_fallthru
      _
    // Predicated region
    $region14: #{tpu_custom_call.1} parent=1 // pred_check
      _
    $region15: #{tpu_custom_call.1} parent=1 // pred_check_branch
      %46 = sbr.rel (0) target = $region17
    $region16: #{tpu_custom_call.1} parent=1 // pred_region
      _
    $region17: #{tpu_custom_call.1} parent=1 // pred_fallthru
      _
    // Predicated region
    $region18: #{tpu_custom_call.1} parent=1 // pred_check
      _
    $region19: #{tpu_custom_call.1} parent=1 // pred_check_branch
      %48 = sbr.rel (0) target = $region21
    $region20: #{tpu_custom_call.1} parent=1 // pred_region
      %49 = dma.done [#allocation4], 128
    $region21: #{tpu_custom_call.1} parent=1 // pred_fallthru
      _
    // Predicated region
    $region22: #{tpu_custom_call.1} parent=1 // pred_check
      _
    $region23: #{tpu_custom_call.1} parent=1 // pred_check_branch
      %51 = sbr.rel (0) target = $region25
    $region24: #{tpu_custom_call.1} parent=1 // pred_region
      %52 = dma.done [#allocation7], 128
    $region25: #{tpu_custom_call.1} parent=1 // pred_fallthru
      _
    // Predicated region
    $region26: #{tpu_custom_call.1} parent=1 // pred_check
      _
    $region27: #{tpu_custom_call.1} parent=1 // pred_check_branch
      %54 = sbr.rel (0) target = $region29
    $region28: #{tpu_custom_call.1} parent=1 // pred_region
      %55 = dma.done [#allocation7], 512
    $region29: #{tpu_custom_call.1} parent=1 // pred_fallthru
      _
    %v56 = vld [vmem:[#allocation3] sm:$0xff]
    %v57 = vld [vmem:[#allocation8] sm:$0xff]
    %v58 = vld [vmem:[#allocation8 + $0x8] sm:$0xff]
    %v59 = vld [vmem:[#allocation8 + $0x10] sm:$0xff]
    %v60 = vld [vmem:[#allocation8 + $0x18] sm:$0xff]
    %vm61 = vcmask 261120
    %v63 = vsel %vm61, %v56, 0
    %65 = vmatprep.subr.mxu0 0.0
    %66 = vmatpush1.msra.mxu0 %v57
    %67 = vmatprep.subr.mxu0 0.0
    %68 = vmatpush1.msra.mxu0 %v58
    %69 = vmatprep.subr.mxu0 0.0
    %70 = vmatpush1.msra.mxu0 %v59
    %71 = vmatprep.subr.mxu0 0.0
    %72 = vmatpush1.msra.mxu0 %v60
    %73 = vmatprep.subr.mxu0 0.0
    %74 = vmatpush1.msra.mxu0 0.0
    %75 = vmatprep.subr.mxu0 0.0
    %76 = vmatpush1.msra.mxu0 0.0
    %77 = vmatprep.subr.mxu0 0.0
    %78 = vmatpush1.msra.mxu0 0.0
    %79 = vmatprep.subr.mxu0 0.0
    %80 = vmatpush1.msra.mxu0 0.0
    %81 = vmatprep.subr.mxu0 0.0
    %82 = vmatpush1.msra.mxu0 0.0
    %83 = vmatprep.subr.mxu0 0.0
    %84 = vmatpush1.msra.mxu0 0.0
    %85 = vmatprep.subr.mxu0 0.0
    %86 = vmatpush1.msra.mxu0 0.0
    %87 = vmatprep.subr.mxu0 0.0
    %88 = vmatpush1.msra.mxu0 0.0
    %89 = vmatprep.subr.mxu0 0.0
    %90 = vmatpush1.msra.mxu0 0.0
    %91 = vmatprep.subr.mxu0 0.0
    %92 = vmatpush1.msra.mxu0 0.0
    %93 = vmatprep.subr.mxu0 0.0
    %94 = vmatpush1.msra.mxu0 0.0
    %95 = vmatprep.subr.mxu0 0.0
    %96 = vmatpush1.msra.mxu0 0.0
    %97 = vmatprep.subr.mxu0 0.0
    %98 = vmatpush1.msra.mxu0 0.0
    %99 = vmatprep.subr.mxu0 0.0
    %100 = vmatpush1.msra.mxu0 0.0
    %101 = vmatprep.subr.mxu0 0.0
    %102 = vmatpush1.msra.mxu0 0.0
    %103 = vmatprep.subr.mxu0 0.0
    %104 = vmatpush1.msra.mxu0 0.0
    %105 = vmatprep.subr.mxu0 0.0
    %106 = vmatpush1.msra.mxu0 0.0
    %107 = vmatprep.subr.mxu0 0.0
    %108 = vmatpush1.msra.mxu0 0.0
    %109 = vmatprep.subr.mxu0 0.0
    %110 = vmatpush1.msra.mxu0 0.0
    %111 = vmatprep.subr.mxu0 0.0
    %112 = vmatpush1.msra.mxu0 0.0
    %113 = vmatprep.subr.mxu0 0.0
    %114 = vmatpush1.msra.mxu0 0.0
    %115 = vmatprep.subr.mxu0 0.0
    %116 = vmatpush1.msra.mxu0 0.0
    %117 = vmatprep.subr.mxu0 0.0
    %118 = vmatpush1.msra.mxu0 0.0
    %119 = vmatprep.subr.mxu0 0.0
    %120 = vmatpush1.msra.mxu0 0.0
    %121 = vmatprep.subr.mxu0 0.0
    %122 = vmatpush1.msra.mxu0 0.0
    %123 = vmatprep.subr.mxu0 0.0
    %124 = vmatpush1.msra.mxu0 0.0
    %125 = vmatprep.subr.mxu0 0.0
    %126 = vmatpush1.msra.mxu0 0.0
    %127 = vmatprep.subr.mxu0 0.0
    %128 = vmatpush1.msra.mxu0 0.0
    %129 = vmatprep.mubr.f32.mxu0 0.0
    %130 = vmatmul.mubr.f32.gmra.mrb[0].mxu0 %v63
    %v131 = vpop.f32.mrb[0].mxu0
    %v132 = vadd.f32 0.0, %v131
    %v133 = vpop.f32.mrb[0].mxu0
    %134 = vdwg.mxu0
    %v135 = vld [vmem:[#allocation6] sm:$0xff]
    %v136 = vmul.f32 %v132, %v135
    %v137 = vsel %vm61, %v136, 0.0
    %138 = vadd.xlane.f32.xlu0 %v137
    %v139 = vpop.xlane.xlu0 %138
    %s140 = sld [smem:[#allocation2]]
    %v141 = vstv %s140
    %v142 = vadd.f32 %v139, %v141
    %143 = vxpose.xlu0.b32.start [1/16] %v142, 128
    %144 = vxpose.xlu0.b32.cont [2/16] 0.0, 128
    %145 = vxpose.xlu0.b32.cont [3/16] 0.0, 128
    %146 = vxpose.xlu0.b32.cont [4/16] 0.0, 128
    %147 = vxpose.xlu0.b32.cont [5/16] 0.0, 128
    %148 = vxpose.xlu0.b32.cont [6/16] 0.0, 128
    %149 = vxpose.xlu0.b32.cont [7/16] 0.0, 128
    %150 = vxpose.xlu0.b32.cont [8/16] 0.0, 128
    %151 = vxpose.xlu0.b32.cont [9/16] 0.0, 128
    %152 = vxpose.xlu0.b32.cont [10/16] 0.0, 128
    %153 = vxpose.xlu0.b32.cont [11/16] 0.0, 128
    %154 = vxpose.xlu0.b32.cont [12/16] 0.0, 128
    %155 = vxpose.xlu0.b32.cont [13/16] 0.0, 128
    %156 = vxpose.xlu0.b32.cont [14/16] 0.0, 128
    %157 = vxpose.xlu0.b32.cont [15/16] 0.0, 128
    %158 = vxpose.xlu0.b32.end [16/16] 0.0, 128
    %v159 = vpop.trf.xlu0
    %v160 = vpop.trf.xlu0
    %v161 = vpop.trf.xlu0
    %v162 = vpop.trf.xlu0
    %v163 = vpop.trf.xlu0
    %v164 = vpop.trf.xlu0
    %v165 = vpop.trf.xlu0
    %v166 = vpop.trf.xlu0
    %v167 = vpop.trf.xlu0
    %v168 = vpop.trf.xlu0
    %v169 = vpop.trf.xlu0
    %v170 = vpop.trf.xlu0
    %v171 = vpop.trf.xlu0
    %v172 = vpop.trf.xlu0
    %v173 = vpop.trf.xlu0
    %v174 = vpop.trf.xlu0
    %vm175 = vcmask 57344
    %176 = vst.msk [vmem:[#allocation9] sm:$0x1] %vm175, %v159
    // Predicated region
    $region30: #{tpu_custom_call.1} parent=1 // pred_check
      _
    $region31: #{tpu_custom_call.1} parent=1 // pred_check_branch
      %178 = sbr.rel (0) target = $region33
    $region32: #{tpu_custom_call.1} parent=1 // pred_region
      %s180 = ssub.s32 16, 16
      %181 = vsyncadd [#allocation5], %s180
      %s183 = sshll.u32 [#allocation9], 4
      %s184 = int_to_ptr.vmem [resolvable:$true] %s183
      %186 = dma.vmem_to_hbm [thread:$0]  %s184, 16, %s4, [#allocation5]
    $region33: #{tpu_custom_call.1} parent=1 // pred_fallthru
      _
    // Predicated region
    $region34: #{tpu_custom_call.1} parent=1 // pred_check
      _
    $region35: #{tpu_custom_call.1} parent=1 // pred_check_branch
      %188 = sbr.rel (0) target = $region37
    $region36: #{tpu_custom_call.1} parent=1 // pred_region
      %189 = dma.done [#allocation5], 16
    $region37: #{tpu_custom_call.1} parent=1 // pred_fallthru
      _
    %190 = vsyncpa [#allocation4], 1
    %191 = vsyncpa [#allocation7], 1
    %192 = vsyncpa [#allocation5], 1

</llo_original>
